<compile_context>
chip_gen: v7x
topology: tpu7x:2x2x1
jax: 0.10.0
libtpu: 0.0.40
codegen_flags: <defaults>
</compile_context>

<pallas_src>
import math

import jax
import jax.numpy as jnp
from jax.experimental import pallas as pl
from jax.experimental.pallas import tpu as pltpu


# ----------------------------- pe table ------------------------------------- #

def make_positional_encoding_table(d_model: int, max_len: int, dtype=jnp.float32):
    """Sinusoidal table, shape (max_len, d_model) — same math as the PyTorch
    __init__ (leading singleton batch dim dropped; broadcast happens via tiling)."""
    position = jnp.arange(max_len, dtype=jnp.float32)[:, None]              # (L, 1)
    div_term = jnp.exp(
        jnp.arange(0, d_model, 2, dtype=jnp.float32) * (-math.log(10000.0) / d_model)
    )                                                                        # (D/2,)
    angles = position * div_term                                             # (L, D/2)
    pe = jnp.zeros((max_len, d_model), dtype=jnp.float32)
    pe = pe.at[:, 0::2].set(jnp.sin(angles))
    pe = pe.at[:, 1::2].set(jnp.cos(angles))
    return pe.astype(dtype)


# ----------------------------- kernels --------------------------------------- #

def _pe_add_flat_kernel(x_ref, pe_ref, o_ref):
    # x_ref/o_ref: (TB, TL) lane-flattened (seq*d) tiles; pe_ref: (1, TL).
    # Lane-dense broadcast add (pe broadcasts over the TB batch rows).
    o_ref[...] = x_ref[...] + pe_ref[...]


def _pe_add_flag_kernel(flag_ref, x_ref, pe_ref, o_ref):
    # flag_ref: (1,) int32 scalar-prefetch (SMEM) — modality flag 0/1.
    # x_ref: (TB, TS, D); pe_ref: (TS, D); o_ref: (TB, TS, D+4).
    d = x_ref.shape[-1]
    tb, ts = x_ref.shape[0], x_ref.shape[1]
    nflags = o_ref.shape[-1] - d
    # Fused single pass: positional add into the first D lanes, constant flag
    # fill into the trailing lanes (no second read/write pass over the tensor).
    o_ref[:, :, :d] = x_ref[...] + pe_ref[...]
    flag = flag_ref[0].astype(o_ref.dtype)
    o_ref[:, :, d:] = jnp.broadcast_to(flag, (tb, ts, nflags))


# ----------------------------- sizing helpers -------------------------------- #

def _round_down(v: int, m: int) -> int:
    return max(m, (v // m) * m)


def _detect_vmem_budget_bytes() -> int:
    """Generation-aware per-kernel VMEM budget: ~half of physical VMEM, capped
    at 64 MiB (v5e/v6e: 128 MiB physical -> 64 MiB; v7x: 64 MiB -> 32 MiB).
    Falls back to a 32 MiB budget if the hardware query is unavailable."""
    try:
        cap = int(pltpu.get_tpu_info().vmem_capacity_bytes)
        return max(16 << 20, min(cap // 2, 64 << 20))
    except Exception:
        return 32 << 20


# ----------------------------- module ----------------------------------------- #

class PositionalEncodingPallas:
    def __init__(self, d_model: int, dual_modality: bool = False,
                 dropout: float = 0.1, max_len: int = 5000):
        self.d_model = d_model
        self.dual_modality = dual_modality
        self.dropout_p = dropout          # eval-mode: identity (see TODO above)
        self.max_len = max_len
        # f32 reference table (exposed for callers / reference checks).
        self.pe = make_positional_encoding_table(d_model, max_len)
        # Per-dtype cache of (pe_2d (L, D), pe_flat (1, L*D)) — built once per
        # dtype so no per-call cast/slice pass over the table.
        self._pe_cache = {}
        # Cached modality-flag scalars (avoid per-call host->device transfer).
        self._flag = {True: jnp.zeros((1,), jnp.int32),
                      False: jnp.ones((1,), jnp.int32)}
        self._vmem_budget = _detect_vmem_budget_bytes()
        # ~6 resident tiles (double-buffered x/out/pe) + headroom.
        self._per_buf = self._vmem_budget // 8

    # -- pe cache -------------------------------------------------------------
    def _pe_for_dtype(self, dtype):
        key = jnp.dtype(dtype).name
        if key not in self._pe_cache:
            pe2d = self.pe.astype(dtype)
            self._pe_cache[key] = (pe2d, pe2d.reshape(1, self.max_len * self.d_model))
        return self._pe_cache[key]

    def _compiler_params(self):
        return pltpu.CompilerParams(
            dimension_semantics=("parallel", "parallel"),
            vmem_limit_bytes=int(self._vmem_budget),
        )

    # -- forward --------------------------------------------------------------
    def __call__(self, x, is_first: bool = True):
        bs, seq, d = x.shape
        assert d == self.d_model
        assert seq <= self.max_len, f"seq={seq} exceeds max_len={self.max_len}"
        if self.dual_modality:
            return self._forward_dual(x, is_first)
        return self._forward_plain(x)

    # Non-dual path: lane-flattened, lane-dense add.
    def _forward_plain(self, x):
        bs, seq, d = x.shape
        itemsize = jnp.dtype(x.dtype).itemsize
        _, pe_flat = self._pe_for_dtype(x.dtype)

        lanes = seq * d
        x2 = x.reshape(bs, lanes)                       # collapses trailing dims (free layout-wise)

        if lanes < 128:
            # Tiny corner: full-extent blocks; slice pe so its block is also full.
            tl = lanes
            pe_arg = pe_flat[:, :lanes]
        else:
            # Lane tile: multiple of 128 (unmasked vst), sized by bytes.
            tl = _round_down(min(lanes, max(128, self._per_buf // itemsize)), 128)
            pe_arg = pe_flat

        # Batch rows per step (sublane dim): multiple of 8 or the full batch.
        tb_want = max(1, self._per_buf // (tl * itemsize))
        tb = bs if (tb_want >= bs or bs <= 8) else min(bs, _round_down(tb_want, 8))

        n_l = pl.cdiv(lanes, tl)
        n_b = pl.cdiv(bs, tb)

        # v7x megacore: guarantee >=2 grid steps when the tile is big enough.
        if n_l * n_b < 2 and tl >= 256 and tb * tl * itemsize >= (2 << 20):
            tl = _round_down(tl // 2, 128)
            n_l = pl.cdiv(lanes, tl)

        y = pl.pallas_call(
            _pe_add_flat_kernel,
            out_shape=jax.ShapeDtypeStruct((bs, lanes), x.dtype),
            # batch innermost: pe tile's block index unchanged across b -> DMA'd
            # once per lane block, not once per (lane, batch) pair.
            grid=(n_l, n_b),
            in_specs=[
                pl.BlockSpec((tb, tl), lambda l, b: (b, l)),
                pl.BlockSpec((1, tl), lambda l, b: (0, l)),
            ],
            out_specs=pl.BlockSpec((tb, tl), lambda l, b: (b, l)),
            compiler_params=self._compiler_params(),
        )(x2, pe_arg)
        return y.reshape(bs, seq, d)

    # Dual-modality path: fused (d+4)-wide output, flag written in-kernel.
    def _forward_dual(self, x, is_first):
        bs, seq, d = x.shape
        itemsize = jnp.dtype(x.dtype).itemsize
        pe2d, _ = self._pe_for_dtype(x.dtype)

        row_bytes = (d + 4) * itemsize                 # widest buffer (output) per seq row
        if seq < 8:
            # Tiny corner: full-extent blocks; slice pe so its block is also full.
            ts = seq
            pe_arg = pe2d[:seq]
        else:
            ts = _round_down(min(seq, max(8, self._per_buf // row_bytes)), 8)
            pe_arg = pe2d

        # Leading (batch) block dim: no alignment constraint, sized by bytes.
        tb = min(bs, max(1, self._per_buf // (ts * row_bytes)))

        n_s = pl.cdiv(seq, ts)
        n_b = pl.cdiv(bs, tb)

        # v7x megacore: guarantee >=2 grid steps when the tile is big enough.
        if n_s * n_b < 2 and ts >= 16 and tb * ts * row_bytes >= (2 << 20):
            ts = _round_down(ts // 2, 8)
            n_s = pl.cdiv(seq, ts)

        flag = self._flag[bool(is_first)]

        grid_spec = pltpu.PrefetchScalarGridSpec(
            num_scalar_prefetch=1,
            grid=(n_s, n_b),                           # batch innermost (pe reuse)
            in_specs=[
                pl.BlockSpec((tb, ts, d), lambda s, b, flag_ref: (b, s, 0)),
                pl.BlockSpec((ts, d), lambda s, b, flag_ref: (s, 0)),
            ],
            out_specs=pl.BlockSpec((tb, ts, d + 4), lambda s, b, flag_ref: (b, s, 0)),
        )
        return pl.pallas_call(
            _pe_add_flag_kernel,
            out_shape=jax.ShapeDtypeStruct((bs, seq, d + 4), x.dtype),
            grid_spec=grid_spec,
            compiler_params=self._compiler_params(),
        )(flag, x, pe_arg)


# ------------------------------ main ------------------------------------------ #

if __name__ == "__main__":
    key = jax.random.PRNGKey(0)
    bs, seq, d_model = 2, 8, 32
    x = jax.random.normal(key, (bs, seq, d_model), dtype=jnp.float32)

    # single-modality module
    mod = PositionalEncodingPallas(d_model=d_model, dual_modality=False, max_len=64)
    out = jax.block_until_ready(mod(x))
    ref = x + mod.pe[:seq][None, :, :]
    assert out.shape == (bs, seq, d_model)
    assert jnp.allclose(out, ref, atol=1e-5, rtol=1e-5)

    # dual-modality module (second modality -> flag = 1.0), fused in-kernel
    mod2 = PositionalEncodingPallas(d_model=d_model, dual_modality=True, max_len=64)
    out2 = jax.block_until_ready(mod2(x, is_first=False))
    ref2 = jnp.concatenate(
        [x + mod2.pe[:seq][None, :, :],
         jnp.ones((bs, seq, 4), dtype=jnp.float32)],
        axis=-1,
    )
    assert out2.shape == (bs, seq, d_model + 4)
    assert jnp.allclose(out2, ref2, atol=1e-5, rtol=1e-5)

    # dual-modality, first modality (flag = 0.0) + a longer, ragged-batch check
    bs3, seq3 = 3, 40
    x3 = jax.random.normal(jax.random.PRNGKey(1), (bs3, seq3, d_model), dtype=jnp.float32)
    out3 = jax.block_until_ready(mod2(x3, is_first=True))
    ref3 = jnp.concatenate(
        [x3 + mod2.pe[:seq3][None, :, :],
         jnp.zeros((bs3, seq3, 4), dtype=jnp.float32)],
        axis=-1,
    )
    assert out3.shape == (bs3, seq3, d_model + 4)
    assert jnp.allclose(out3, ref3, atol=1e-5, rtol=1e-5)

    print("KERNEL_OK")
</pallas_src>

<mosaic_0001>
module attributes {stable_mosaic.version = 11 : i64} {
  func.func @_pe_add_flat_kernel(%arg0: i32, %arg1: i32, %arg2: memref<2x256xf32, #tpu.memory_space<vmem>>, %arg3: memref<1x256xf32, #tpu.memory_space<vmem>>, %arg4: memref<2x256xf32, #tpu.memory_space<vmem>>) attributes {dimension_semantics = [#tpu.dimension_semantics<parallel>, #tpu.dimension_semantics<parallel>], iteration_bounds = array<i64: 1, 1>, scalar_prefetch = 0 : i64, scratch_operands = 0 : i64, tpu.core_type = #tpu.core_type<tc>, window_params = [{transform_indices = @transform_0, window_bounds = array<i64: 2, 256>}, {transform_indices = @transform_1, window_bounds = array<i64: 1, 256>}, {transform_indices = @transform_2, window_bounds = array<i64: 2, 256>}]} {
    %c0 = arith.constant 0 : index
    %c0_0 = arith.constant 0 : index
    %0 = vector.load %arg2[%c0, %c0_0] : memref<2x256xf32, #tpu.memory_space<vmem>>, vector<2x256xf32>
    %c0_1 = arith.constant 0 : index
    %c0_2 = arith.constant 0 : index
    %1 = vector.load %arg3[%c0_1, %c0_2] : memref<1x256xf32, #tpu.memory_space<vmem>>, vector<1x256xf32>
    %2 = vector.broadcast %1 : vector<1x256xf32> to vector<2x256xf32>
    %3 = arith.addf %0, %2 : vector<2x256xf32>
    %c0_3 = arith.constant 0 : index
    %c0_4 = arith.constant 0 : index
    %4 = vector.load %arg4[%c0_3, %c0_4] : memref<2x256xf32, #tpu.memory_space<vmem>>, vector<2x256xf32>
    tpu.vector_store %arg4[%c0_3, %c0_4], %3 {strides = array<i32>} : memref<2x256xf32, #tpu.memory_space<vmem>>, vector<2x256xf32>,
    return
  }
  func.func @transform_0(%arg0: i32, %arg1: i32) -> (i32, i32) {
    %c0_i32 = arith.constant 0 : i32
    return %arg1, %arg0 : i32, i32
  }
  func.func @transform_1(%arg0: i32, %arg1: i32) -> (i32, i32) {
    %c0_i32 = arith.constant 0 : i32
    %c0_i32_0 = arith.constant 0 : i32
    return %c0_i32, %arg0 : i32, i32
  }
  func.func @transform_2(%arg0: i32, %arg1: i32) -> (i32, i32) {
    %c0_i32 = arith.constant 0 : i32
    return %arg1, %arg0 : i32, i32
  }
}

</mosaic_0001>

<llo_original>
// kernel: tpu_custom_call.1
$region0: #{tpu_custom_call.1}
  #allocation0 [shape = 'u32[]', space=smem, size = 0x4, offset = 0x4, fixed_abs, tag = 'smem constant byte address 0x4 - core index']
  #allocation1 [shape = 'u32[144,128]{1,0:T(1,128)}', space=vmem, size = 0x12000, scoped, tag = 'internal scratch']
  %s0 = inlined_call_operand.hbm [shape: f32[2,256], index: 0, kind: input, shape index: {}]
  %s1 = inlined_call_operand.hbm [shape: f32[1,2048], index: 1, kind: input, shape index: {}]
  %s2 = inlined_call_operand.hbm [shape: f32[2,256], index: 2, kind: output, shape index: {}]
  %s3 = sld [smem:[#allocation0]]
  $region26: #{tpu_custom_call.1} parent=0
    _
  %s5 = ssub.s32 1, %s3
  %s6 = scalar_select 0, %s5, %s3
  $region1: #{tpu_custom_call.1} parent=0
    #allocation2 [shape = 'u8[2048]{0}', space=vmem, size = 0x800, scoped, tag = 'input window, operand 0, single buffered']
    #allocation3 [shape = 's32[1]{0}', space=sflag, size = 0x4, scoped, tag = 'scoped memory for tpu_custom_call.1']
    #allocation4 [shape = 's32[1]{0}', space=sflag, size = 0x4, scoped, tag = 'scoped memory for tpu_custom_call.1']
    #allocation5 [shape = 'u8[1024]{0}', space=vmem, size = 0x400, scoped, tag = 'input window, operand 1, single buffered']
    #allocation6 [shape = 's32[1]{0}', space=sflag, size = 0x4, scoped, tag = 'scoped memory for tpu_custom_call.1']
    #allocation7 [shape = 'u8[2048]{0}', space=vmem, size = 0x800, scoped, tag = 'output window, operand 0, single buffered']
    %7 = vsyncpa [#allocation3], 0
    %8 = vsyncpa [#allocation6], 0
    %9 = vsyncpa [#allocation4], 0
    // Predicated region
    $region2: #{tpu_custom_call.1} parent=1 // pred_check
      _
    $region3: #{tpu_custom_call.1} parent=1 // pred_check_branch
      %11 = sbr.rel (0) target = $region5
    $region4: #{tpu_custom_call.1} parent=1 // pred_region
      %s13 = ssub.s32 64, 64
      %14 = vsyncadd [#allocation3], %s13
      %s16 = sshll.u32 [#allocation2], 4
      %s17 = int_to_ptr.vmem [resolvable:$true] %s16
      %19 = dma.hbm_to_vmem [thread:$0]  %s0, 64, %s17, [#allocation3]
    $region5: #{tpu_custom_call.1} parent=1 // pred_fallthru
      _
    // Predicated region
    $region6: #{tpu_custom_call.1} parent=1 // pred_check
      _
    $region7: #{tpu_custom_call.1} parent=1 // pred_check_branch
      %21 = sbr.rel (0) target = $region9
    $region8: #{tpu_custom_call.1} parent=1 // pred_region
      %s23 = ssub.s32 32, 32
      %24 = vsyncadd [#allocation6], %s23
      %s26 = sshll.u32 [#allocation5], 4
      %s27 = int_to_ptr.vmem [resolvable:$true] %s26
      %29 = dma.hbm_to_vmem [thread:$0]  %s1, 32, %s27, [#allocation6]
    $region9: #{tpu_custom_call.1} parent=1 // pred_fallthru
      _
    // Predicated region
    $region10: #{tpu_custom_call.1} parent=1 // pred_check
      _
    $region11: #{tpu_custom_call.1} parent=1 // pred_check_branch
      %31 = sbr.rel (0) target = $region13
    $region12: #{tpu_custom_call.1} parent=1 // pred_region
      %32 = dma.done [#allocation3], 64
    $region13: #{tpu_custom_call.1} parent=1 // pred_fallthru
      _
    // Predicated region
    $region14: #{tpu_custom_call.1} parent=1 // pred_check
      _
    $region15: #{tpu_custom_call.1} parent=1 // pred_check_branch
      %34 = sbr.rel (0) target = $region17
    $region16: #{tpu_custom_call.1} parent=1 // pred_region
      %35 = dma.done [#allocation6], 32
    $region17: #{tpu_custom_call.1} parent=1 // pred_fallthru
      _
    %v36 = vld [vmem:[#allocation2] sm:$0xf]
    %v37 = vld [vmem:[#allocation5] sm:$0x3]
    %v39 = vlaneseq
    %v40 = vshrl.u32 %v39, 7
    %v41 = vsub.s32 0, %v40
    %v42 = vrot.slane %v37, %v41
    %v43 = vlaneseq
    %v44 = vshrl.u32 %v43, 7
    %v45 = vsub.s32 1, %v44
    %v46 = vrot.slane %v37, %v45
    %v47 = vcombine.low %v42, %v46
    %v49 = vunpack.c.l.s4 1983009808
    %v50 = vunpack.c.0.s8 %v49
    %v51 = vlaneseq
    %v52 = vshrl.u32 %v51, 7
    %v53 = vsub.s32 %v50, %v52
    %v54 = vrot.slane %v47, %v53
    %v56 = vadd.f32 %v36, %v54
    %57 = vst [vmem:[#allocation7] sm:$0xf] %v56
    // Predicated region
    $region18: #{tpu_custom_call.1} parent=1 // pred_check
      _
    $region19: #{tpu_custom_call.1} parent=1 // pred_check_branch
      %59 = sbr.rel (0) target = $region21
    $region20: #{tpu_custom_call.1} parent=1 // pred_region
      %s61 = ssub.s32 64, 64
      %62 = vsyncadd [#allocation4], %s61
      %s64 = sshll.u32 [#allocation7], 4
      %s65 = int_to_ptr.vmem [resolvable:$true] %s64
      %67 = dma.vmem_to_hbm [thread:$0]  %s65, 64, %s2, [#allocation4]
    $region21: #{tpu_custom_call.1} parent=1 // pred_fallthru
      _
    // Predicated region
    $region22: #{tpu_custom_call.1} parent=1 // pred_check
      _
    $region23: #{tpu_custom_call.1} parent=1 // pred_check_branch
      %69 = sbr.rel (0) target = $region25
    $region24: #{tpu_custom_call.1} parent=1 // pred_region
      %70 = dma.done [#allocation4], 64
    $region25: #{tpu_custom_call.1} parent=1 // pred_fallthru
      _
    %71 = vsyncpa [#allocation3], 1
    %72 = vsyncpa [#allocation6], 1
    %73 = vsyncpa [#allocation4], 1

</llo_original>
